<compile_context>
chip_gen: v6e
topology: v6e:2x2x1
jax: 0.10.0
libtpu: 0.0.40
codegen_flags: <defaults>
</compile_context>

<pallas_src>
import functools
import math

import jax
import jax.numpy as jnp
from jax.experimental import pallas as pl
from jax.experimental.pallas import tpu as pltpu


_LANE = 128
_MAX_GROUP = 16            # use the packed path only when 128/gcd(depth,128) <= this
_BLOCK_BYTES = 2 << 20     # ~2 MiB f32 output block per grid step


def _is_pow2(n: int) -> bool:
    return n > 0 and (n & (n - 1)) == 0


def _mod_depth(xv, depth: int):
    # Floor-mod (matches torch/python `%` for negative values).  Power-of-two
    # depth uses a bitwise AND (same result in two's complement) to avoid the
    # integer-divide sequence.
    if _is_pow2(depth):
        return xv & (depth - 1)
    return xv % depth


def _onehot_packed_kernel(x_ref, o_ref, *, depth: int, group: int):
    # x_ref: (TR, group) int32  ->  o_ref: (TR, group*depth) float32
    # Packed row r holds `group` consecutive one-hot vectors; sub-vector g
    # occupies lanes [g*depth, (g+1)*depth).
    xv = _mod_depth(x_ref[...], depth)                           # (TR, group)
    cls = jax.lax.broadcasted_iota(jnp.int32, (1, depth), 1)     # (1, depth)
    for g in range(group):                                       # compile-time unroll
        o_ref[:, g * depth:(g + 1) * depth] = (
            xv[:, g:g + 1] == cls).astype(jnp.float32)


def _onehot_rows_kernel(x_ref, o_ref, *, depth: int):
    # Generic fallback: x_ref: (TR, 1) int32  ->  o_ref: (TR, depth) float32
    xv = _mod_depth(x_ref[...], depth)                           # (TR, 1)
    cls = jax.lax.broadcasted_iota(jnp.int32, (1, depth), 1)     # (1, depth)
    o_ref[...] = (xv == cls).astype(jnp.float32)


def _compiler_params():
    return pltpu.CompilerParams(
        dimension_semantics=("parallel",),       # v7x: shard row tiles over 2 TCs
        vmem_limit_bytes=32 * 1024 * 1024,       # explicit; safe on v5e/v6e/v7x
    )


def _row_tile(total_rows: int, row_bytes: int) -> int:
    tr = max(8, (_BLOCK_BYTES // row_bytes) // 8 * 8)
    return total_rows if total_rows <= tr else tr


def _one_hot_packed(x_flat: jax.Array, depth: int, group: int) -> jax.Array:
    width = group * depth                         # multiple of 128 (lane-dense)
    rows = x_flat.shape[0] // group
    x2 = x_flat.reshape(rows, group)
    tr = _row_tile(rows, 4 * width)
    kernel = functools.partial(_onehot_packed_kernel, depth=depth, group=group)
    return pl.pallas_call(
        kernel,
        out_shape=jax.ShapeDtypeStruct((rows, width), jnp.float32),
        grid=(pl.cdiv(rows, tr),),
        in_specs=[pl.BlockSpec((tr, group), lambda i: (i, 0))],
        out_specs=pl.BlockSpec((tr, width), lambda i: (i, 0)),
        compiler_params=_compiler_params(),
    )(x2)


def _one_hot_rows(x_flat: jax.Array, depth: int) -> jax.Array:
    n = x_flat.shape[0]
    x2 = x_flat.reshape(n, 1)
    tr = _row_tile(n, 4 * depth)
    kernel = functools.partial(_onehot_rows_kernel, depth=depth)
    return pl.pallas_call(
        kernel,
        out_shape=jax.ShapeDtypeStruct((n, depth), jnp.float32),
        grid=(pl.cdiv(n, tr),),
        in_specs=[pl.BlockSpec((tr, 1), lambda i: (i, 0))],
        out_specs=pl.BlockSpec((tr, depth), lambda i: (i, 0)),
        compiler_params=_compiler_params(),
    )(x2)


def one_hot_pallas(x: jax.Array, depth: int) -> jax.Array:
    """x: (B, T) integer array -> (B, T, depth) float32 one-hot of (x % depth)."""
    if x.ndim != 2:
        raise ValueError(f"expected (B, T) input, got shape {x.shape}")
    if depth < 1:
        raise ValueError(f"depth must be >= 1, got {depth}")
    B, T = x.shape
    n = B * T
    # Note: torch `long` indices are narrowed to int32 here; class indices are
    # always tiny in practice so no wraparound occurs.
    x_flat = x.reshape(n).astype(jnp.int32)

    group = _LANE // math.gcd(depth, _LANE)      # rows packed per output row
    if group <= _MAX_GROUP and n % group == 0:
        out2 = _one_hot_packed(x_flat, depth, group)   # (n // group, group*depth)
    else:
        out2 = _one_hot_rows(x_flat, depth)            # (n, depth)

    # Pure-metadata reshape: both layouts are exactly the row-major flattening
    # of (B, T, depth) -- no transpose / extra HBM pass.
    return out2.reshape(B, T, depth)


if __name__ == "__main__":
    key = jax.random.PRNGKey(0)
    B, T = 2, 16

    # 1) Packed lane-dense path, power-of-two depth (group = 4).
    depth = 32
    x = jax.random.randint(key, (B, T), minval=-5, maxval=3 * depth, dtype=jnp.int32)
    out = jax.block_until_ready(one_hot_pallas(x, depth))
    ref = jax.nn.one_hot(jnp.mod(x, depth), depth, dtype=jnp.float32)
    assert out.shape == (B, T, depth) and out.dtype == jnp.float32
    assert bool(jnp.all(out == ref)), "packed path (depth=32) mismatch"

    # 2) Packed lane-dense path, non-power-of-two depth (group = 16, W = 384).
    depth2 = 24
    x2 = jax.random.randint(jax.random.PRNGKey(1), (B, T),
                            minval=-7, maxval=3 * depth2, dtype=jnp.int32)
    out2 = jax.block_until_ready(one_hot_pallas(x2, depth2))
    ref2 = jax.nn.one_hot(jnp.mod(x2, depth2), depth2, dtype=jnp.float32)
    assert out2.shape == (B, T, depth2)
    assert bool(jnp.all(out2 == ref2)), "packed path (depth=24) mismatch"

    # 3) Packed path with group = 1 (depth already a multiple of 128).
    depth3 = 256
    x3 = jax.random.randint(jax.random.PRNGKey(2), (B, T),
                            minval=-9, maxval=3 * depth3, dtype=jnp.int32)
    out3 = jax.block_until_ready(one_hot_pallas(x3, depth3))
    ref3 = jax.nn.one_hot(jnp.mod(x3, depth3), depth3, dtype=jnp.float32)
    assert out3.shape == (B, T, depth3)
    assert bool(jnp.all(out3 == ref3)), "packed path (depth=256) mismatch"

    # 4) Generic fallback path (odd depth -> packing group too large).
    depth4 = 13
    x4 = jax.random.randint(jax.random.PRNGKey(3), (B, T),
                            minval=-4, maxval=3 * depth4, dtype=jnp.int32)
    out4 = jax.block_until_ready(one_hot_pallas(x4, depth4))
    ref4 = jax.nn.one_hot(jnp.mod(x4, depth4), depth4, dtype=jnp.float32)
    assert out4.shape == (B, T, depth4)
    assert bool(jnp.all(out4 == ref4)), "generic path (depth=13) mismatch"

    print("KERNEL_OK")
</pallas_src>

<mosaic_0001>
module attributes {stable_mosaic.version = 11 : i64} {
  func.func @_onehot_packed_kernel(%arg0: i32, %arg1: memref<8x4xi32, #tpu.memory_space<vmem>>, %arg2: memref<8x128xf32, #tpu.memory_space<vmem>>) attributes {dimension_semantics = [#tpu.dimension_semantics<parallel>], iteration_bounds = array<i64: 1>, scalar_prefetch = 0 : i64, scratch_operands = 0 : i64, tpu.core_type = #tpu.core_type<tc>, window_params = [{transform_indices = @transform_0, window_bounds = array<i64: 8, 4>}, {transform_indices = @transform_1, window_bounds = array<i64: 8, 128>}]} {
    %c0 = arith.constant 0 : index
    %c0_0 = arith.constant 0 : index
    %0 = vector.load %arg1[%c0, %c0_0] : memref<8x4xi32, #tpu.memory_space<vmem>>, vector<8x4xi32>
    %c31_i32 = arith.constant 31 : i32
    %1 = vector.broadcast %c31_i32 : i32 to vector<8x4xi32>
    %2 = arith.andi %0, %1 : vector<8x4xi32>
    %3 = tpu.iota {dimensions = array<i32: 1>} : vector<1x32xi32>
    %4 = vector.extract_strided_slice %2 {offsets = [0, 0], sizes = [8, 1], strides = [1, 1]} : vector<8x4xi32> to vector<8x1xi32>
    %5 = vector.broadcast %4 : vector<8x1xi32> to vector<8x32xi32>
    %6 = vector.broadcast %3 : vector<1x32xi32> to vector<8x32xi32>
    %7 = arith.cmpi eq, %5, %6 : vector<8x32xi32>
    %8 = arith.extui %7 : vector<8x32xi1> to vector<8x32xi32>
    %9 = arith.sitofp %8 : vector<8x32xi32> to vector<8x32xf32>
    %c0_1 = arith.constant 0 : index
    %c0_2 = arith.constant 0 : index
    %10 = vector.load %arg2[%c0_1, %c0_2] : memref<8x128xf32, #tpu.memory_space<vmem>>, vector<8x32xf32>
    tpu.vector_store %arg2[%c0_1, %c0_2], %9 {strides = array<i32>} : memref<8x128xf32, #tpu.memory_space<vmem>>, vector<8x32xf32>,
    %11 = vector.extract_strided_slice %2 {offsets = [0, 1], sizes = [8, 1], strides = [1, 1]} : vector<8x4xi32> to vector<8x1xi32>
    %12 = vector.broadcast %11 : vector<8x1xi32> to vector<8x32xi32>
    %13 = vector.broadcast %3 : vector<1x32xi32> to vector<8x32xi32>
    %14 = arith.cmpi eq, %12, %13 : vector<8x32xi32>
    %15 = arith.extui %14 : vector<8x32xi1> to vector<8x32xi32>
    %16 = arith.sitofp %15 : vector<8x32xi32> to vector<8x32xf32>
    %c0_3 = arith.constant 0 : index
    %c32 = arith.constant 32 : index
    %17 = vector.load %arg2[%c0_3, %c32] : memref<8x128xf32, #tpu.memory_space<vmem>>, vector<8x32xf32>
    tpu.vector_store %arg2[%c0_3, %c32], %16 {strides = array<i32>} : memref<8x128xf32, #tpu.memory_space<vmem>>, vector<8x32xf32>,
    %18 = vector.extract_strided_slice %2 {offsets = [0, 2], sizes = [8, 1], strides = [1, 1]} : vector<8x4xi32> to vector<8x1xi32>
    %19 = vector.broadcast %18 : vector<8x1xi32> to vector<8x32xi32>
    %20 = vector.broadcast %3 : vector<1x32xi32> to vector<8x32xi32>
    %21 = arith.cmpi eq, %19, %20 : vector<8x32xi32>
    %22 = arith.extui %21 : vector<8x32xi1> to vector<8x32xi32>
    %23 = arith.sitofp %22 : vector<8x32xi32> to vector<8x32xf32>
    %c0_4 = arith.constant 0 : index
    %c64 = arith.constant 64 : index
    %24 = vector.load %arg2[%c0_4, %c64] : memref<8x128xf32, #tpu.memory_space<vmem>>, vector<8x32xf32>
    tpu.vector_store %arg2[%c0_4, %c64], %23 {strides = array<i32>} : memref<8x128xf32, #tpu.memory_space<vmem>>, vector<8x32xf32>,
    %25 = vector.extract_strided_slice %2 {offsets = [0, 3], sizes = [8, 1], strides = [1, 1]} : vector<8x4xi32> to vector<8x1xi32>
    %26 = vector.broadcast %25 : vector<8x1xi32> to vector<8x32xi32>
    %27 = vector.broadcast %3 : vector<1x32xi32> to vector<8x32xi32>
    %28 = arith.cmpi eq, %26, %27 : vector<8x32xi32>
    %29 = arith.extui %28 : vector<8x32xi1> to vector<8x32xi32>
    %30 = arith.sitofp %29 : vector<8x32xi32> to vector<8x32xf32>
    %c0_5 = arith.constant 0 : index
    %c96 = arith.constant 96 : index
    %31 = vector.load %arg2[%c0_5, %c96] : memref<8x128xf32, #tpu.memory_space<vmem>>, vector<8x32xf32>
    tpu.vector_store %arg2[%c0_5, %c96], %30 {strides = array<i32>} : memref<8x128xf32, #tpu.memory_space<vmem>>, vector<8x32xf32>,
    return
  }
  func.func @transform_0(%arg0: i32) -> (i32, i32) {
    %c0_i32 = arith.constant 0 : i32
    %c0_i32_0 = arith.constant 0 : i32
    return %arg0, %c0_i32 : i32, i32
  }
  func.func @transform_1(%arg0: i32) -> (i32, i32) {
    %c0_i32 = arith.constant 0 : i32
    %c0_i32_0 = arith.constant 0 : i32
    return %arg0, %c0_i32 : i32, i32
  }
}

</mosaic_0001>

<llo_original>
// kernel: tpu_custom_call.1
$region0: #{tpu_custom_call.1}
  #allocation0 [shape = 'u32[]', space=smem, size = 0x4, offset = 0x4, fixed_abs, tag = 'smem constant byte address 0x4 - core index']
  #allocation1 [shape = 'u32[144,128]{1,0:T(1,128)}', space=vmem, size = 0x12000, scoped, tag = 'internal scratch']
  %s0 = inlined_call_operand.vmem [shape: s32[8,4], index: 0, kind: input, shape index: {}]
  %s1 = inlined_call_operand.hbm [shape: f32[8,128], index: 1, kind: output, shape index: {}]
  %s2 = sld [smem:[#allocation0]]
  $region14: #{tpu_custom_call.1} parent=0
    _
  %s4 = ssub.s32 1, %s2
  %s5 = scalar_select 0, %s4, %s2
  $region1: #{tpu_custom_call.1} parent=0
    #allocation2 [shape = 'u8[4096]{0}', space=vmem, size = 0x1000, scoped, tag = 'output window, operand 0, single buffered']
    #allocation3 [shape = 's32[1]{0}', space=sflag, size = 0x4, scoped, tag = 'scoped memory for tpu_custom_call.1']
    %6 = vsyncpa [#allocation3], 0
    // Predicated region
    $region2: #{tpu_custom_call.1} parent=1 // pred_check
      _
    $region3: #{tpu_custom_call.1} parent=1 // pred_check_branch
      %8 = sbr.rel (0) target = $region5
    $region4: #{tpu_custom_call.1} parent=1 // pred_region
      _
    $region5: #{tpu_custom_call.1} parent=1 // pred_fallthru
      _
    %v9 = vld [vmem:[%s0] sm:$0xff]
    %v10 = vand.u32 %v9, 31
    %v11 = vlaneseq
    %v12 = vand.u32 %v11, 127
    %13 = vset.pattern.permute.xlu0 0
    %14 = vperm.xlu0 %13, %v10
    %v15 = vpop.permute.xlu0 %14
    %vm16 = vcmp.eq.s32.totalorder %v15, %v12
    %v17 = vsel %vm16, 1, 0
    %v18 = vcvt.s32.f32 %v17
    %vm19 = vcmask 261120
    %20 = vst.msk [vmem:[#allocation2] sm:$0xff] %vm19, %v18
    %21 = vset.pattern.permute.xlu0 1
    %22 = vperm.xlu0 %21, %v10
    %v23 = vpop.permute.xlu0 %22
    %vm24 = vcmp.eq.s32.totalorder %v23, %v12
    %v25 = vsel %vm24, 1, 0
    %v26 = vcvt.s32.f32 %v25
    %28 = vrot.lane.b32.xlu0 %v26, 32
    %v29 = vpop.permute.xlu0 %28
    %vm31 = vcmask 523520
    %32 = vst.msk [vmem:[#allocation2] sm:$0xff] %vm31, %v29
    %33 = vset.pattern.permute.xlu0 2
    %34 = vperm.xlu0 %33, %v10
    %v35 = vpop.permute.xlu0 %34
    %vm36 = vcmp.eq.s32.totalorder %v35, %v12
    %v37 = vsel %vm36, 1, 0
    %v38 = vcvt.s32.f32 %v37
    %40 = vrot.lane.b32.xlu0 %v38, 64
    %v41 = vpop.permute.xlu0 %40
    %vm43 = vcmask 785920
    %44 = vst.msk [vmem:[#allocation2] sm:$0xff] %vm43, %v41
    %45 = vset.pattern.permute.xlu0 3
    %46 = vperm.xlu0 %45, %v10
    %v47 = vpop.permute.xlu0 %46
    %vm48 = vcmp.eq.s32.totalorder %v47, %v12
    %v49 = vsel %vm48, 1, 0
    %v50 = vcvt.s32.f32 %v49
    %52 = vrot.lane.b32.xlu0 %v50, 96
    %v53 = vpop.permute.xlu0 %52
    %vm55 = vcmask 1048320
    %56 = vst.msk [vmem:[#allocation2] sm:$0xff] %vm55, %v53
    // Predicated region
    $region6: #{tpu_custom_call.1} parent=1 // pred_check
      _
    $region7: #{tpu_custom_call.1} parent=1 // pred_check_branch
      %58 = sbr.rel (0) target = $region9
    $region8: #{tpu_custom_call.1} parent=1 // pred_region
      %s60 = ssub.s32 128, 128
      %61 = vsyncadd [#allocation3], %s60
      %s63 = sshll.u32 [#allocation2], 4
      %s64 = int_to_ptr.vmem [resolvable:$true] %s63
      %66 = dma.vmem_to_hbm [thread:$0]  %s64, 128, %s1, [#allocation3]
    $region9: #{tpu_custom_call.1} parent=1 // pred_fallthru
      _
    // Predicated region
    $region10: #{tpu_custom_call.1} parent=1 // pred_check
      _
    $region11: #{tpu_custom_call.1} parent=1 // pred_check_branch
      %68 = sbr.rel (0) target = $region13
    $region12: #{tpu_custom_call.1} parent=1 // pred_region
      %69 = dma.done [#allocation3], 128
    $region13: #{tpu_custom_call.1} parent=1 // pred_fallthru
      _
    %70 = vsyncpa [#allocation3], 1

</llo_original>
